<compile_context>
chip_gen: v7x
topology: tpu7x:2x2x1
jax: 0.10.0
libtpu: 0.0.40
codegen_flags: <defaults>
</compile_context>

<pallas_src>
import functools

import jax
import jax.numpy as jnp
from jax.experimental import pallas as pl
from jax.experimental.pallas import tpu as pltpu


def fc_classifier_kernel(x_ref, scale_ref, w1_ref, b1_ref, w2_ref, b2_ref, o_ref):
    # fc1: [bb, F](bf16) @ [F, F](bf16) -> f32 accumulator, + bias.
    h = jnp.dot(x_ref[...], w1_ref[...], preferred_element_type=jnp.float32)
    h = h + b1_ref[...]
    # Fused ReLU + dropout: scale_ref holds 0.0 (dropped) or 2.0 (kept * 1/(1-p)).
    h = jnp.maximum(h, 0.0) * scale_ref[...]
    # fc2: [bb, F](bf16) @ [F, C_pad](bf16) -> f32, + bias. Output is lane-dense
    # (C padded to a multiple of 128), so the store is an unmasked vst.
    out = jnp.dot(h.astype(jnp.bfloat16), w2_ref[...],
                  preferred_element_type=jnp.float32)
    o_ref[...] = (out + b2_ref[...]).astype(o_ref.dtype)


@functools.partial(jax.jit, static_argnames=("training", "block_b"))
def fc_classifier(x, w1, b1, w2, b2, drop_key, *, training=True, block_b=128):
    """x: [B, F] f32; w1: [F, F]; b1: [1, F]; w2: [F, C]; b2: [1, C]; drop_key: PRNG key."""
    B, F = x.shape
    C = w2.shape[1]
    LANE = 128
    C_pad = pl.cdiv(C, LANE) * LANE

    # bf16 MXU operands (f32 accumulation happens inside the kernel).
    x_b = x.astype(jnp.bfloat16)
    w1_b = w1.astype(jnp.bfloat16)
    w2_b = jnp.zeros((F, C_pad), jnp.bfloat16).at[:, :C].set(w2.astype(jnp.bfloat16))
    b1_f = b1.reshape(1, F).astype(jnp.float32)
    b2_p = jnp.zeros((1, C_pad), jnp.float32).at[:, :C].set(b2.reshape(1, C))

    # Dropout keep-scale (training mode, p=0.5, matching f.dropout defaults).
    # TODO(synk): randomness comes from jax.random (not torch's RNG); it does not
    # bit-match torch dropout, only its statistics.
    if training:
        keep = jax.random.bernoulli(drop_key, 0.5, (B, F))
        scale = keep.astype(jnp.float32) * 2.0
    else:
        scale = jnp.ones((B, F), jnp.float32)

    bb = min(block_b, B)
    grid = (pl.cdiv(B, bb),)

    out_padded = pl.pallas_call(
        fc_classifier_kernel,
        out_shape=jax.ShapeDtypeStruct((B, C_pad), jnp.float32),
        grid=grid,
        in_specs=[
            pl.BlockSpec((bb, F), lambda i: (i, 0)),        # x tile (per batch block)
            pl.BlockSpec((bb, F), lambda i: (i, 0)),        # dropout scale tile
            pl.BlockSpec((F, F), lambda i: (0, 0)),         # w1 (VMEM-resident)
            pl.BlockSpec((1, F), lambda i: (0, 0)),         # b1 (resident)
            pl.BlockSpec((F, C_pad), lambda i: (0, 0)),     # w2 padded (resident)
            pl.BlockSpec((1, C_pad), lambda i: (0, 0)),     # b2 padded (resident)
        ],
        out_specs=pl.BlockSpec((bb, C_pad), lambda i: (i, 0)),
        compiler_params=pltpu.CompilerParams(
            dimension_semantics=("parallel",)),             # megacore-shardable on v7x
    )(x_b, scale, w1_b, b1_f, w2_b, b2_p)

    return out_padded[:, :C]


if __name__ == "__main__":
    # Small shapes consistent with the module: batch=8, num_ftrs=128, cls=8.
    B, F, C = 8, 128, 8

    key = jax.random.PRNGKey(0)
    kx, k1, k2, k3, k4, kd = jax.random.split(key, 6)

    x = jax.random.normal(kx, (B, F), dtype=jnp.float32)

    # Deterministic parameter init (uniform like torch Linear default, bound = 1/sqrt(fan_in)).
    bound = 1.0 / jnp.sqrt(jnp.float32(F))
    w1 = jax.random.uniform(k1, (F, F), jnp.float32, -bound, bound)
    b1 = jax.random.uniform(k2, (1, F), jnp.float32, -bound, bound)
    w2 = jax.random.uniform(k3, (F, C), jnp.float32, -bound, bound)
    b2 = jax.random.uniform(k4, (1, C), jnp.float32, -bound, bound)

    out = fc_classifier(x, w1, b1, w2, b2, kd)
    out = jax.block_until_ready(out)
    assert out.shape == (B, C), out.shape
    assert jnp.all(jnp.isfinite(out)), "non-finite output"
    print("KERNEL_OK")
</pallas_src>

<mosaic_0001>
module attributes {stable_mosaic.version = 11 : i64} {
  func.func @fc_classifier_kernel(%arg0: i32, %arg1: memref<8x128xbf16, #tpu.memory_space<vmem>>, %arg2: memref<8x128xf32, #tpu.memory_space<vmem>>, %arg3: memref<128x128xbf16, #tpu.memory_space<vmem>>, %arg4: memref<1x128xf32, #tpu.memory_space<vmem>>, %arg5: memref<128x128xbf16, #tpu.memory_space<vmem>>, %arg6: memref<1x128xf32, #tpu.memory_space<vmem>>, %arg7: memref<8x128xf32, #tpu.memory_space<vmem>>) attributes {dimension_semantics = [#tpu.dimension_semantics<parallel>], iteration_bounds = array<i64: 1>, scalar_prefetch = 0 : i64, scratch_operands = 0 : i64, tpu.core_type = #tpu.core_type<tc>, window_params = [{transform_indices = @transform_0, window_bounds = array<i64: 8, 128>}, {transform_indices = @transform_1, window_bounds = array<i64: 8, 128>}, {pipeline_mode = #tpu.pipeline_mode<synchronous>, transform_indices = @transform_2, window_bounds = array<i64: 128, 128>}, {pipeline_mode = #tpu.pipeline_mode<synchronous>, transform_indices = @transform_3, window_bounds = array<i64: 1, 128>}, {pipeline_mode = #tpu.pipeline_mode<synchronous>, transform_indices = @transform_4, window_bounds = array<i64: 128, 128>}, {pipeline_mode = #tpu.pipeline_mode<synchronous>, transform_indices = @transform_5, window_bounds = array<i64: 1, 128>}, {transform_indices = @transform_6, window_bounds = array<i64: 8, 128>}]} {
    %c0 = arith.constant 0 : index
    %c0_0 = arith.constant 0 : index
    %0 = vector.load %arg1[%c0, %c0_0] : memref<8x128xbf16, #tpu.memory_space<vmem>>, vector<8x128xbf16>
    %c0_1 = arith.constant 0 : index
    %c0_2 = arith.constant 0 : index
    %1 = vector.load %arg3[%c0_1, %c0_2] : memref<128x128xbf16, #tpu.memory_space<vmem>>, vector<128x128xbf16>
    %cst = arith.constant dense<0.000000e+00> : vector<8x128xf32>
    %2 = tpu.matmul %0, %1, %cst {dimension_numbers = #tpu.dot_dimension_numbers<[1], [0], [0], [1], [0, 0, 1, 1], [], []>} : vector<8x128xbf16>, vector<128x128xbf16>, vector<8x128xf32> -> vector<8x128xf32>
    %c0_3 = arith.constant 0 : index
    %c0_4 = arith.constant 0 : index
    %3 = vector.load %arg4[%c0_3, %c0_4] : memref<1x128xf32, #tpu.memory_space<vmem>>, vector<1x128xf32>
    %4 = vector.broadcast %3 : vector<1x128xf32> to vector<8x128xf32>
    %5 = arith.addf %2, %4 : vector<8x128xf32>
    %cst_5 = arith.constant 0.000000e+00 : f32
    %6 = vector.broadcast %cst_5 : f32 to vector<8x128xf32>
    %7 = arith.maximumf %5, %6 : vector<8x128xf32>
    %c0_6 = arith.constant 0 : index
    %c0_7 = arith.constant 0 : index
    %8 = vector.load %arg2[%c0_6, %c0_7] : memref<8x128xf32, #tpu.memory_space<vmem>>, vector<8x128xf32>
    %9 = arith.mulf %7, %8 : vector<8x128xf32>
    %10 = arith.truncf %9 : vector<8x128xf32> to vector<8x128xbf16>
    %c0_8 = arith.constant 0 : index
    %c0_9 = arith.constant 0 : index
    %11 = vector.load %arg5[%c0_8, %c0_9] : memref<128x128xbf16, #tpu.memory_space<vmem>>, vector<128x128xbf16>
    %cst_10 = arith.constant dense<0.000000e+00> : vector<8x128xf32>
    %12 = tpu.matmul %10, %11, %cst_10 {dimension_numbers = #tpu.dot_dimension_numbers<[1], [0], [0], [1], [0, 0, 1, 1], [], []>} : vector<8x128xbf16>, vector<128x128xbf16>, vector<8x128xf32> -> vector<8x128xf32>
    %c0_11 = arith.constant 0 : index
    %c0_12 = arith.constant 0 : index
    %13 = vector.load %arg6[%c0_11, %c0_12] : memref<1x128xf32, #tpu.memory_space<vmem>>, vector<1x128xf32>
    %14 = vector.broadcast %13 : vector<1x128xf32> to vector<8x128xf32>
    %15 = arith.addf %12, %14 : vector<8x128xf32>
    %c0_13 = arith.constant 0 : index
    %c0_14 = arith.constant 0 : index
    %16 = vector.load %arg7[%c0_13, %c0_14] : memref<8x128xf32, #tpu.memory_space<vmem>>, vector<8x128xf32>
    tpu.vector_store %arg7[%c0_13, %c0_14], %15 {strides = array<i32>} : memref<8x128xf32, #tpu.memory_space<vmem>>, vector<8x128xf32>,
    return
  }
  func.func @transform_0(%arg0: i32) -> (i32, i32) {
    %c0_i32 = arith.constant 0 : i32
    %c0_i32_0 = arith.constant 0 : i32
    return %arg0, %c0_i32 : i32, i32
  }
  func.func @transform_1(%arg0: i32) -> (i32, i32) {
    %c0_i32 = arith.constant 0 : i32
    %c0_i32_0 = arith.constant 0 : i32
    return %arg0, %c0_i32 : i32, i32
  }
  func.func @transform_2(%arg0: i32) -> (i32, i32) {
    %c0_i32 = arith.constant 0 : i32
    %c0_i32_0 = arith.constant 0 : i32
    %c0_i32_1 = arith.constant 0 : i32
    return %c0_i32, %c0_i32_0 : i32, i32
  }
  func.func @transform_3(%arg0: i32) -> (i32, i32) {
    %c0_i32 = arith.constant 0 : i32
    %c0_i32_0 = arith.constant 0 : i32
    %c0_i32_1 = arith.constant 0 : i32
    return %c0_i32, %c0_i32_0 : i32, i32
  }
  func.func @transform_4(%arg0: i32) -> (i32, i32) {
    %c0_i32 = arith.constant 0 : i32
    %c0_i32_0 = arith.constant 0 : i32
    %c0_i32_1 = arith.constant 0 : i32
    return %c0_i32, %c0_i32_0 : i32, i32
  }
  func.func @transform_5(%arg0: i32) -> (i32, i32) {
    %c0_i32 = arith.constant 0 : i32
    %c0_i32_0 = arith.constant 0 : i32
    %c0_i32_1 = arith.constant 0 : i32
    return %c0_i32, %c0_i32_0 : i32, i32
  }
  func.func @transform_6(%arg0: i32) -> (i32, i32) {
    %c0_i32 = arith.constant 0 : i32
    %c0_i32_0 = arith.constant 0 : i32
    return %arg0, %c0_i32 : i32, i32
  }
}

</mosaic_0001>

<llo_original>
// kernel: fc_classifier.1
$region0: #{fc_classifier.1}
  #allocation0 [shape = 'u32[]', space=smem, size = 0x4, offset = 0x4, fixed_abs, tag = 'smem constant byte address 0x4 - core index']
  #allocation1 [shape = 'u32[144,128]{1,0:T(1,128)}', space=vmem, size = 0x12000, scoped, tag = 'internal scratch']
  %s0 = inlined_call_operand.vmem [shape: bf16[8,128], index: 0, kind: input, shape index: {}]
  %s1 = inlined_call_operand.vmem [shape: f32[8,128], index: 1, kind: input, shape index: {}]
  %s2 = inlined_call_operand.vmem [shape: bf16[128,128], index: 2, kind: input, shape index: {}]
  %s3 = inlined_call_operand.vmem [shape: f32[1,128], index: 3, kind: input, shape index: {}]
  %s4 = inlined_call_operand.vmem [shape: bf16[128,128], index: 4, kind: input, shape index: {}]
  %s5 = inlined_call_operand.vmem [shape: f32[1,128], index: 5, kind: input, shape index: {}]
  %s6 = inlined_call_operand.hbm [shape: f32[8,128], index: 6, kind: output, shape index: {}]
  %s7 = sld [smem:[#allocation0]]
  $region34: #{fc_classifier.1} parent=0
    _
  %s9 = ssub.s32 1, %s7
  %s10 = scalar_select 0, %s9, %s7
  $region1: #{fc_classifier.1} parent=0
    #allocation2 [shape = 'u8[4096]{0}', space=vmem, size = 0x1000, scoped, tag = 'output window, operand 0, single buffered']
    #allocation3 [shape = 's32[1]{0}', space=sflag, size = 0x4, scoped, tag = 'scoped memory for fc_classifier.1']
    %11 = vsyncpa [#allocation3], 0
    // Predicated region
    $region2: #{fc_classifier.1} parent=1 // pred_check
      _
    $region3: #{fc_classifier.1} parent=1 // pred_check_branch
      %13 = sbr.rel (0) target = $region5
    $region4: #{fc_classifier.1} parent=1 // pred_region
      _
    $region5: #{fc_classifier.1} parent=1 // pred_fallthru
      _
    // Predicated region
    $region6: #{fc_classifier.1} parent=1 // pred_check
      _
    $region7: #{fc_classifier.1} parent=1 // pred_check_branch
      %15 = sbr.rel (0) target = $region9
    $region8: #{fc_classifier.1} parent=1 // pred_region
      _
    $region9: #{fc_classifier.1} parent=1 // pred_fallthru
      _
    // Predicated region
    $region10: #{fc_classifier.1} parent=1 // pred_check
      _
    $region11: #{fc_classifier.1} parent=1 // pred_check_branch
      %17 = sbr.rel (0) target = $region13
    $region12: #{fc_classifier.1} parent=1 // pred_region
      _
    $region13: #{fc_classifier.1} parent=1 // pred_fallthru
      _
    // Predicated region
    $region14: #{fc_classifier.1} parent=1 // pred_check
      _
    $region15: #{fc_classifier.1} parent=1 // pred_check_branch
      %19 = sbr.rel (0) target = $region17
    $region16: #{fc_classifier.1} parent=1 // pred_region
      _
    $region17: #{fc_classifier.1} parent=1 // pred_fallthru
      _
    // Predicated region
    $region18: #{fc_classifier.1} parent=1 // pred_check
      _
    $region19: #{fc_classifier.1} parent=1 // pred_check_branch
      %21 = sbr.rel (0) target = $region21
    $region20: #{fc_classifier.1} parent=1 // pred_region
      _
    $region21: #{fc_classifier.1} parent=1 // pred_fallthru
      _
    // Predicated region
    $region22: #{fc_classifier.1} parent=1 // pred_check
      _
    $region23: #{fc_classifier.1} parent=1 // pred_check_branch
      %23 = sbr.rel (0) target = $region25
    $region24: #{fc_classifier.1} parent=1 // pred_region
      _
    $region25: #{fc_classifier.1} parent=1 // pred_fallthru
      _
    %v25 = vld [vmem:[%s0] sm:$0xf]
    %v26 = vld [vmem:[%s2] sm:$0xf]
    %v27 = vld [vmem:[%s2 + $0x4] sm:$0xf]
    %v28 = vld [vmem:[%s2 + $0x8] sm:$0xf]
    %v29 = vld [vmem:[%s2 + $0xc] sm:$0xf]
    %v30 = vld [vmem:[%s2 + $0x10] sm:$0xf]
    %v31 = vld [vmem:[%s2 + $0x14] sm:$0xf]
    %v32 = vld [vmem:[%s2 + $0x18] sm:$0xf]
    %v33 = vld [vmem:[%s2 + $0x1c] sm:$0xf]
    %v34 = vld [vmem:[%s2 + $0x20] sm:$0xf]
    %v35 = vld [vmem:[%s2 + $0x24] sm:$0xf]
    %v36 = vld [vmem:[%s2 + $0x28] sm:$0xf]
    %v37 = vld [vmem:[%s2 + $0x2c] sm:$0xf]
    %v38 = vld [vmem:[%s2 + $0x30] sm:$0xf]
    %v39 = vld [vmem:[%s2 + $0x34] sm:$0xf]
    %v40 = vld [vmem:[%s2 + $0x38] sm:$0xf]
    %v41 = vld [vmem:[%s2 + $0x3c] sm:$0xf]
    %v42 = vld [vmem:[%s3] sm:$0x1]
    %v44 = vlaneseq
    %v45 = vshrl.u32 %v44, 7
    %v46 = vsub.s32 0, %v45
    %v47 = vrot.slane %v42, %v46
    %v65 = vunpack.c.l.b16 %v26
    %v66 = vunpack.c.l.b16 %v27
    %v67 = vunpack.c.l.b16 %v28
    %v68 = vunpack.c.l.b16 %v29
    %v69 = vunpack.c.l.b16 %v30
    %v70 = vunpack.c.l.b16 %v31
    %v71 = vunpack.c.l.b16 %v32
    %v72 = vunpack.c.l.b16 %v33
    %v73 = vunpack.c.l.b16 %v34
    %v74 = vunpack.c.l.b16 %v35
    %v75 = vunpack.c.l.b16 %v36
    %v76 = vunpack.c.l.b16 %v37
    %v77 = vunpack.c.l.b16 %v38
    %v78 = vunpack.c.l.b16 %v39
    %v79 = vunpack.c.l.b16 %v40
    %v80 = vunpack.c.l.b16 %v41
    %v81 = vpack.c.b16 %v66, %v65
    %v82 = vpack.c.b16 %v68, %v67
    %v83 = vpack.c.b16 %v70, %v69
    %v84 = vpack.c.b16 %v72, %v71
    %v85 = vpack.c.b16 %v74, %v73
    %v86 = vpack.c.b16 %v76, %v75
    %v87 = vpack.c.b16 %v78, %v77
    %v88 = vpack.c.b16 %v80, %v79
    %97 = vmatprep.subr.bf16.mxu0 0
    %98 = vmatpush1.bf16.msra.mxu0 %v81
    %99 = vmatprep.subr.bf16.mxu0 0
    %100 = vmatpush1.bf16.msra.mxu0 %v82
    %101 = vmatprep.subr.bf16.mxu0 0
    %102 = vmatpush1.bf16.msra.mxu0 %v83
    %103 = vmatprep.subr.bf16.mxu0 0
    %104 = vmatpush1.bf16.msra.mxu0 %v84
    %105 = vmatprep.subr.bf16.mxu0 0
    %106 = vmatpush1.bf16.msra.mxu0 %v85
    %107 = vmatprep.subr.bf16.mxu0 0
    %108 = vmatpush1.bf16.msra.mxu0 %v86
    %109 = vmatprep.subr.bf16.mxu0 0
    %110 = vmatpush1.bf16.msra.mxu0 %v87
    %111 = vmatprep.subr.bf16.mxu0 0
    %112 = vmatpush1.bf16.msra.mxu0 %v88
    %113 = vmatprep.subr.bf16.mxu0 0
    %114 = vmatpush1.bf16.msra.mxu0 0
    %115 = vmatprep.subr.bf16.mxu0 0
    %116 = vmatpush1.bf16.msra.mxu0 0
    %117 = vmatprep.subr.bf16.mxu0 0
    %118 = vmatpush1.bf16.msra.mxu0 0
    %119 = vmatprep.subr.bf16.mxu0 0
    %120 = vmatpush1.bf16.msra.mxu0 0
    %121 = vmatprep.subr.bf16.mxu0 0
    %122 = vmatpush1.bf16.msra.mxu0 0
    %123 = vmatprep.subr.bf16.mxu0 0
    %124 = vmatpush1.bf16.msra.mxu0 0
    %125 = vmatprep.subr.bf16.mxu0 0
    %126 = vmatpush1.bf16.msra.mxu0 0
    %127 = vmatprep.subr.bf16.mxu0 0
    %128 = vmatpush1.bf16.msra.mxu0 0
    %129 = vmatprep.mubr.bf16.mxu0 0
    %130 = vmatmul.mubr.bf16.gmra.mrb[0].mxu0 %v25
    %v131 = vpop.f32.mrb[0].mxu0
    %v132 = vadd.f32 %v47, %v131
    %v133 = vpop.f32.mrb[0].mxu0
    %v134 = vpop.f32.mrb[0].mxu0
    %v135 = vpop.f32.mrb[0].mxu0
    %136 = vdwg.mxu0
    %v137 = vmax.f32 %v132, 0.0
    %v138 = vld [vmem:[%s1] sm:$0xff]
    %v139 = vmul.f32 %v137, %v138
    %v140 = vpack.c.bf16 %v139, %v139
    %v141 = vld [vmem:[%s4] sm:$0xf]
    %v142 = vld [vmem:[%s4 + $0x4] sm:$0xf]
    %v143 = vld [vmem:[%s4 + $0x8] sm:$0xf]
    %v144 = vld [vmem:[%s4 + $0xc] sm:$0xf]
    %v145 = vld [vmem:[%s4 + $0x10] sm:$0xf]
    %v146 = vld [vmem:[%s4 + $0x14] sm:$0xf]
    %v147 = vld [vmem:[%s4 + $0x18] sm:$0xf]
    %v148 = vld [vmem:[%s4 + $0x1c] sm:$0xf]
    %v149 = vld [vmem:[%s4 + $0x20] sm:$0xf]
    %v150 = vld [vmem:[%s4 + $0x24] sm:$0xf]
    %v151 = vld [vmem:[%s4 + $0x28] sm:$0xf]
    %v152 = vld [vmem:[%s4 + $0x2c] sm:$0xf]
    %v153 = vld [vmem:[%s4 + $0x30] sm:$0xf]
    %v154 = vld [vmem:[%s4 + $0x34] sm:$0xf]
    %v155 = vld [vmem:[%s4 + $0x38] sm:$0xf]
    %v156 = vld [vmem:[%s4 + $0x3c] sm:$0xf]
    %v157 = vld [vmem:[%s5] sm:$0x1]
    %v159 = vlaneseq
    %v160 = vshrl.u32 %v159, 7
    %v161 = vsub.s32 0, %v160
    %v162 = vrot.slane %v157, %v161
    %v180 = vunpack.c.l.b16 %v141
    %v181 = vunpack.c.l.b16 %v142
    %v182 = vunpack.c.l.b16 %v143
    %v183 = vunpack.c.l.b16 %v144
    %v184 = vunpack.c.l.b16 %v145
    %v185 = vunpack.c.l.b16 %v146
    %v186 = vunpack.c.l.b16 %v147
    %v187 = vunpack.c.l.b16 %v148
    %v188 = vunpack.c.l.b16 %v149
    %v189 = vunpack.c.l.b16 %v150
    %v190 = vunpack.c.l.b16 %v151
    %v191 = vunpack.c.l.b16 %v152
    %v192 = vunpack.c.l.b16 %v153
    %v193 = vunpack.c.l.b16 %v154
    %v194 = vunpack.c.l.b16 %v155
    %v195 = vunpack.c.l.b16 %v156
    %v196 = vpack.c.b16 %v181, %v180
    %v197 = vpack.c.b16 %v183, %v182
    %v198 = vpack.c.b16 %v185, %v184
    %v199 = vpack.c.b16 %v187, %v186
    %v200 = vpack.c.b16 %v189, %v188
    %v201 = vpack.c.b16 %v191, %v190
    %v202 = vpack.c.b16 %v193, %v192
    %v203 = vpack.c.b16 %v195, %v194
    %212 = vmatprep.subr.bf16.mxu0 0
    %213 = vmatpush1.bf16.msra.mxu0 %v196
    %214 = vmatprep.subr.bf16.mxu0 0
    %215 = vmatpush1.bf16.msra.mxu0 %v197
    %216 = vmatprep.subr.bf16.mxu0 0
    %217 = vmatpush1.bf16.msra.mxu0 %v198
    %218 = vmatprep.subr.bf16.mxu0 0
    %219 = vmatpush1.bf16.msra.mxu0 %v199
    %220 = vmatprep.subr.bf16.mxu0 0
    %221 = vmatpush1.bf16.msra.mxu0 %v200
    %222 = vmatprep.subr.bf16.mxu0 0
    %223 = vmatpush1.bf16.msra.mxu0 %v201
    %224 = vmatprep.subr.bf16.mxu0 0
    %225 = vmatpush1.bf16.msra.mxu0 %v202
    %226 = vmatprep.subr.bf16.mxu0 0
    %227 = vmatpush1.bf16.msra.mxu0 %v203
    %228 = vmatprep.subr.bf16.mxu0 0
    %229 = vmatpush1.bf16.msra.mxu0 0
    %230 = vmatprep.subr.bf16.mxu0 0
    %231 = vmatpush1.bf16.msra.mxu0 0
    %232 = vmatprep.subr.bf16.mxu0 0
    %233 = vmatpush1.bf16.msra.mxu0 0
    %234 = vmatprep.subr.bf16.mxu0 0
    %235 = vmatpush1.bf16.msra.mxu0 0
    %236 = vmatprep.subr.bf16.mxu0 0
    %237 = vmatpush1.bf16.msra.mxu0 0
    %238 = vmatprep.subr.bf16.mxu0 0
    %239 = vmatpush1.bf16.msra.mxu0 0
    %240 = vmatprep.subr.bf16.mxu0 0
    %241 = vmatpush1.bf16.msra.mxu0 0
    %242 = vmatprep.subr.bf16.mxu0 0
    %243 = vmatpush1.bf16.msra.mxu0 0
    %244 = vmatprep.mubr.bf16.mxu0 0
    %245 = vmatmul.mubr.bf16.gmra.mrb[0].mxu0 %v140
    %v246 = vpop.f32.mrb[0].mxu0
    %v247 = vadd.f32 %v162, %v246
    %v248 = vpop.f32.mrb[0].mxu0
    %v249 = vpop.f32.mrb[0].mxu0
    %v250 = vpop.f32.mrb[0].mxu0
    %251 = vdwg.mxu0
    %252 = vst [vmem:[#allocation2] sm:$0xff] %v247
    // Predicated region
    $region26: #{fc_classifier.1} parent=1 // pred_check
      _
    $region27: #{fc_classifier.1} parent=1 // pred_check_branch
      %254 = sbr.rel (0) target = $region29
    $region28: #{fc_classifier.1} parent=1 // pred_region
      %s256 = ssub.s32 128, 128
      %257 = vsyncadd [#allocation3], %s256
      %s259 = sshll.u32 [#allocation2], 4
      %s260 = int_to_ptr.vmem [resolvable:$true] %s259
      %262 = dma.vmem_to_hbm [thread:$0]  %s260, 128, %s6, [#allocation3]
    $region29: #{fc_classifier.1} parent=1 // pred_fallthru
      _
    // Predicated region
    $region30: #{fc_classifier.1} parent=1 // pred_check
      _
    $region31: #{fc_classifier.1} parent=1 // pred_check_branch
      %264 = sbr.rel (0) target = $region33
    $region32: #{fc_classifier.1} parent=1 // pred_region
      %265 = dma.done [#allocation3], 128
    $region33: #{fc_classifier.1} parent=1 // pred_fallthru
      _
    %266 = vsyncpa [#allocation3], 1

</llo_original>
